<compile_context>
chip_gen: v6e
topology: v6e:2x2x1
jax: 0.10.0
libtpu: 0.0.40
codegen_flags: <defaults>
</compile_context>

<pallas_src>
import numpy as np
import jax
import jax.numpy as jnp
from jax.experimental import pallas as pl
from jax.experimental.pallas import tpu as pltpu


def get_sinusoid_encoding(position_size: int, hidden_size: int) -> np.ndarray:
    """Same math as the PyTorch reference (numpy, float32)."""
    pos = np.arange(position_size, dtype=np.float64)[:, None]          # (P, 1)
    hid = np.arange(hidden_size, dtype=np.float64)[None, :]            # (1, H)
    angle = pos / np.power(10000.0, 2.0 * (hid // 2) / hidden_size)    # (P, H)
    out = np.array(angle)
    out[:, 0::2] = np.sin(out[:, 0::2])
    out[:, 1::2] = np.cos(out[:, 1::2])
    return out.astype("float32")


def _round_up(x: int, m: int) -> int:
    return (x + m - 1) // m * m


def _posemb_kernel(pos_ref, table_ref, out_ref):
    # pos_ref:   VMEM (row_tile, 1) int32      -- this step's position indices
    # table_ref: VMEM (P, E_pad) float32       -- whole table, resident (single copy)
    # out_ref:   VMEM (row_tile, E_pad) f32    -- lane-dense output tile
    row_tile = out_ref.shape[0]
    P = table_ref.shape[0]

    idx = pos_ref[...]                                             # (row_tile, 1)
    cols = jax.lax.broadcasted_iota(jnp.int32, (row_tile, P), 1)   # (row_tile, P)
    # One compare + select directly in the matmul dtype (no bool->int->f32 chain).
    onehot = jnp.where(cols == idx, jnp.float32(1.0), jnp.float32(0.0))

    # Single MXU matmul == vectorized row gather.  precision=HIGHEST keeps the
    # gathered f32 rows exact (default precision lowers f32 to bf16 passes).
    out_ref[...] = jnp.dot(
        onehot,
        table_ref[...],
        preferred_element_type=jnp.float32,
        precision=jax.lax.Precision.HIGHEST,
    ).astype(out_ref.dtype)


def positional_embedding(pos: jax.Array, table: jax.Array,
                         max_row_tile: int = 1024) -> jax.Array:
    """pos: (B, S) int -> (B, S, E) float32 positional embeddings."""
    B, S = pos.shape
    P, E = table.shape
    N = B * S

    # --- lane-dense output: pad the embedding dim up to a multiple of 128 ---
    E_pad = max(_round_up(E, 128), 128)
    table_f32 = table.astype(jnp.float32)
    if E_pad != E:
        table_f32 = jnp.pad(table_f32, ((0, 0), (0, E_pad - E)))

    # --- row tiling: pick a tile that divides the 8-rounded row count so we
    #     avoid padded rows when possible ---
    pos_flat = pos.reshape(N).astype(jnp.int32)
    n8 = _round_up(N, 8)
    if n8 <= max_row_tile:
        # Split medium problems into two tiles so the "parallel" grid axis can
        # shard across v7x's two TensorCores; tiny problems stay one tile.
        row_tile = _round_up(-(-n8 // 2), 8) if n8 >= 256 else n8
    elif n8 % max_row_tile == 0:
        row_tile = max_row_tile
    elif n8 % 256 == 0:
        row_tile = 256
    else:
        row_tile = max_row_tile
    n_pad = _round_up(n8, row_tile)
    num_tiles = n_pad // row_tile
    if n_pad != N:
        # Padded rows gather table[0]; they are sliced off below (keep that
        # invariant if this wrapper changes).
        pos_flat = jnp.pad(pos_flat, (0, n_pad - N))
    pos_col = pos_flat.reshape(n_pad, 1)

    # --- explicit scoped-VMEM budget: resident table (1x) + double-buffered
    #     output tile + double-buffered (lane-padded) pos tile + one-hot /
    #     matmul temporaries, clamped with headroom under v7x's 64 MiB VMEM ---
    f32b = 4
    vmem_bytes = (
        P * E_pad * f32b                              # resident table, one copy
        + 2 * row_tile * E_pad * f32b                 # output tile, double-buffered
        + 2 * row_tile * 128 * f32b                   # pos tile (lane-padded)
        + 2 * row_tile * _round_up(P, 128) * f32b     # one-hot + matmul temps
        + (2 << 20)                                   # misc headroom
    )
    vmem_bytes = int(min(max(vmem_bytes, 32 << 20), 56 << 20))

    cost = pl.CostEstimate(
        flops=2 * n_pad * P * E_pad,
        transcendentals=0,
        bytes_accessed=n_pad * 4 + P * E_pad * f32b + n_pad * E_pad * f32b,
    )

    out_flat = pl.pallas_call(
        _posemb_kernel,
        out_shape=jax.ShapeDtypeStruct((n_pad, E_pad), jnp.float32),
        grid=(num_tiles,),
        in_specs=[
            pl.BlockSpec((row_tile, 1), lambda i: (i, 0)),       # indices tile
            # Whole table resident in VMEM: single copy, not double-buffered.
            pl.BlockSpec(memory_space=pltpu.MemorySpace.VMEM),
        ],
        out_specs=pl.BlockSpec((row_tile, E_pad), lambda i: (i, 0)),
        compiler_params=pltpu.CompilerParams(
            dimension_semantics=("parallel",),
            vmem_limit_bytes=vmem_bytes,
        ),
        cost_estimate=cost,
    )(pos_col, table_f32)

    out = out_flat
    if n_pad != N:
        out = out[:N]
    if E_pad != E:
        out = out[:, :E]
    return out.reshape(B, S, E)


if __name__ == "__main__":
    # Module config (small, consistent with the forward pass)
    max_length = 16
    emb_size = 32
    B, S = 2, 8

    # Deterministic parameter init: the sinusoid table (as in __init__)
    table = jnp.asarray(get_sinusoid_encoding(max_length, emb_size))

    # Deterministic example input: integer positions in [0, max_length)
    key = jax.random.PRNGKey(0)
    pos = jax.random.randint(key, (B, S), 0, max_length, dtype=jnp.int32)

    out = positional_embedding(pos, table)
    out = jax.block_until_ready(out)

    # Reference check (plain JAX gather).  The HIGHEST-precision one-hot f32
    # matmul gather is exact up to the last ulp.
    ref = jnp.take(table, pos, axis=0)
    assert out.shape == (B, S, emb_size)
    np.testing.assert_allclose(np.asarray(out), np.asarray(ref),
                               rtol=1e-6, atol=1e-6)

    # TODO(synk): detach()/requires_grad_(False) have no Pallas equivalent
    # (no autograd state in the kernel); forward values match exactly.

    print("KERNEL_OK")
</pallas_src>

<mosaic_0001>
module attributes {stable_mosaic.version = 11 : i64} {
  func.func @_posemb_kernel(%arg0: i32, %arg1: memref<16x1xi32, #tpu.memory_space<vmem>>, %arg2: memref<16x128xf32, #tpu.memory_space<vmem>>, %arg3: memref<16x128xf32, #tpu.memory_space<vmem>>) attributes {dimension_semantics = [#tpu.dimension_semantics<parallel>], iteration_bounds = array<i64: 1>, scalar_prefetch = 0 : i64, scratch_operands = 0 : i64, tpu.core_type = #tpu.core_type<tc>, window_params = [{transform_indices = @transform_0, window_bounds = array<i64: 16, 1>}, {pipeline_mode = #tpu.pipeline_mode<synchronous>, transform_indices = @transform_1, window_bounds = array<i64: 16, 128>}, {transform_indices = @transform_2, window_bounds = array<i64: 16, 128>}]} {
    %c0 = arith.constant 0 : index
    %c0_0 = arith.constant 0 : index
    %0 = vector.load %arg1[%c0, %c0_0] : memref<16x1xi32, #tpu.memory_space<vmem>>, vector<16x1xi32>
    %1 = tpu.iota {dimensions = array<i32: 1>} : vector<16x16xi32>
    %2 = vector.broadcast %0 : vector<16x1xi32> to vector<16x16xi32>
    %3 = arith.cmpi eq, %1, %2 : vector<16x16xi32>
    %cst = arith.constant 1.000000e+00 : f32
    %cst_1 = arith.constant 0.000000e+00 : f32
    %4 = vector.broadcast %cst : f32 to vector<16x16xf32>
    %5 = vector.broadcast %cst_1 : f32 to vector<16x16xf32>
    %6 = arith.select %3, %4, %5 : vector<16x16xi1>, vector<16x16xf32>
    %c0_2 = arith.constant 0 : index
    %c0_3 = arith.constant 0 : index
    %7 = vector.load %arg2[%c0_2, %c0_3] : memref<16x128xf32, #tpu.memory_space<vmem>>, vector<16x128xf32>
    %cst_4 = arith.constant dense<0.000000e+00> : vector<16x128xf32>
    %8 = tpu.matmul %6, %7, %cst_4 {dimension_numbers = #tpu.dot_dimension_numbers<[1], [0], [0], [1], [0, 0, 1, 1], [], []>, precision = #tpu.contract_precision<fp32>} : vector<16x16xf32>, vector<16x128xf32>, vector<16x128xf32> -> vector<16x128xf32>
    %c0_5 = arith.constant 0 : index
    %c0_6 = arith.constant 0 : index
    %9 = vector.load %arg3[%c0_5, %c0_6] : memref<16x128xf32, #tpu.memory_space<vmem>>, vector<16x128xf32>
    tpu.vector_store %arg3[%c0_5, %c0_6], %8 {strides = array<i32>} : memref<16x128xf32, #tpu.memory_space<vmem>>, vector<16x128xf32>,
    return
  }
  func.func @transform_0(%arg0: i32) -> (i32, i32) {
    %c0_i32 = arith.constant 0 : i32
    %c0_i32_0 = arith.constant 0 : i32
    return %arg0, %c0_i32 : i32, i32
  }
  func.func @transform_1(%arg0: i32) -> (i32, i32) {
    %c0_i32 = arith.constant 0 : i32
    %c0_i32_0 = arith.constant 0 : i32
    %c0_i32_1 = arith.constant 0 : i32
    return %c0_i32, %c0_i32_0 : i32, i32
  }
  func.func @transform_2(%arg0: i32) -> (i32, i32) {
    %c0_i32 = arith.constant 0 : i32
    %c0_i32_0 = arith.constant 0 : i32
    return %arg0, %c0_i32 : i32, i32
  }
}

</mosaic_0001>

<llo_original>
// kernel: tpu_custom_call.1
$region0: #{tpu_custom_call.1}
  #allocation0 [shape = 'u32[]', space=smem, size = 0x4, offset = 0x4, fixed_abs, tag = 'smem constant byte address 0x4 - core index']
  #allocation1 [shape = 'u32[144,128]{1,0:T(1,128)}', space=vmem, size = 0x12000, scoped, tag = 'internal scratch']
  %s0 = inlined_call_operand.vmem [shape: s32[16,1], index: 0, kind: input, shape index: {}]
  %s1 = inlined_call_operand.vmem [shape: f32[16,128], index: 1, kind: input, shape index: {}]
  %s2 = inlined_call_operand.hbm [shape: f32[16,128], index: 2, kind: output, shape index: {}]
  %s3 = sld [smem:[#allocation0]]
  $region18: #{tpu_custom_call.1} parent=0
    _
  %s5 = ssub.s32 1, %s3
  %s6 = scalar_select 0, %s5, %s3
  $region1: #{tpu_custom_call.1} parent=0
    #allocation2 [shape = 'u8[8192]{0}', space=vmem, size = 0x2000, scoped, tag = 'output window, operand 0, single buffered']
    #allocation3 [shape = 's32[1]{0}', space=sflag, size = 0x4, scoped, tag = 'scoped memory for tpu_custom_call.1']
    %7 = vsyncpa [#allocation3], 0
    // Predicated region
    $region2: #{tpu_custom_call.1} parent=1 // pred_check
      _
    $region3: #{tpu_custom_call.1} parent=1 // pred_check_branch
      %9 = sbr.rel (0) target = $region5
    $region4: #{tpu_custom_call.1} parent=1 // pred_region
      _
    $region5: #{tpu_custom_call.1} parent=1 // pred_fallthru
      _
    // Predicated region
    $region6: #{tpu_custom_call.1} parent=1 // pred_check
      _
    $region7: #{tpu_custom_call.1} parent=1 // pred_check_branch
      %11 = sbr.rel (0) target = $region9
    $region8: #{tpu_custom_call.1} parent=1 // pred_region
      _
    $region9: #{tpu_custom_call.1} parent=1 // pred_fallthru
      _
    %v12 = vld [vmem:[%s0] sm:$0xff]
    %v13 = vld [vmem:[%s0 + $0x8] sm:$0xff]
    %v14 = vlaneseq
    %v15 = vand.u32 %v14, 127
    %16 = vset.pattern.permute.xlu0 0
    %17 = vperm.xlu0 %16, %v12
    %v18 = vpop.permute.xlu0 %17
    %19 = vset.pattern.permute.xlu0 0
    %20 = vperm.xlu0 %19, %v13
    %v21 = vpop.permute.xlu0 %20
    %vm22 = vcmp.eq.s32.totalorder %v15, %v18
    %vm23 = vcmp.eq.s32.totalorder %v15, %v21
    %v24 = vsel %vm22, 1.0, 0.0
    %v25 = vsel %vm23, 1.0, 0.0
    %v26 = vld [vmem:[%s1] sm:$0xff]
    %v27 = vld [vmem:[%s1 + $0x8] sm:$0xff]
    %vm28 = vcmask 130048
    %v30 = vsel %vm28, %v24, 0
    %v33 = vsel %vm28, %v25, 0
    %35 = vmatprep.subr.mxu0 0.0
    %36 = vmatpush1.msra.mxu0 0.0
    %37 = vmatprep.subr.mxu0 0.0
    %38 = vmatpush1.msra.mxu0 0.0
    %39 = vmatprep.subr.mxu0 0.0
    %40 = vmatpush1.msra.mxu0 0.0
    %41 = vmatprep.subr.mxu0 0.0
    %42 = vmatpush1.msra.mxu0 0.0
    %43 = vmatprep.subr.mxu0 0.0
    %44 = vmatpush1.msra.mxu0 0.0
    %45 = vmatprep.subr.mxu0 0.0
    %46 = vmatpush1.msra.mxu0 0.0
    %47 = vmatprep.subr.mxu0 0.0
    %48 = vmatpush1.msra.mxu0 0.0
    %49 = vmatprep.subr.mxu0 0.0
    %50 = vmatpush1.msra.mxu0 0.0
    %51 = vmatprep.subr.mxu0 0.0
    %52 = vmatpush1.msra.mxu0 0.0
    %53 = vmatprep.subr.mxu0 0.0
    %54 = vmatpush1.msra.mxu0 0.0
    %55 = vmatprep.subr.mxu0 0.0
    %56 = vmatpush1.msra.mxu0 0.0
    %57 = vmatprep.subr.mxu0 0.0
    %58 = vmatpush1.msra.mxu0 0.0
    %59 = vmatprep.subr.mxu0 0.0
    %60 = vmatpush1.msra.mxu0 0.0
    %61 = vmatprep.subr.mxu0 0.0
    %62 = vmatpush1.msra.mxu0 0.0
    %63 = vmatprep.subr.mxu0 0.0
    %v64 = vand.u32 %v27, 4294901760
    %65 = vmatpush1.msra.mxu0 %v64
    %66 = vmatprep.subr.mxu0 0.0
    %v67 = vand.u32 %v26, 4294901760
    %68 = vmatpush1.msra.mxu0 %v67
    %69 = vmatprep.subr.mxu0 0.0
    %70 = vmatpush2.msra.mxu0 0.0
    %71 = vmatprep.subr.mxu0 0.0
    %72 = vmatpush2.msra.mxu0 0.0
    %73 = vmatprep.subr.mxu0 0.0
    %74 = vmatpush2.msra.mxu0 0.0
    %75 = vmatprep.subr.mxu0 0.0
    %76 = vmatpush2.msra.mxu0 0.0
    %77 = vmatprep.subr.mxu0 0.0
    %78 = vmatpush2.msra.mxu0 0.0
    %79 = vmatprep.subr.mxu0 0.0
    %80 = vmatpush2.msra.mxu0 0.0
    %81 = vmatprep.subr.mxu0 0.0
    %82 = vmatpush2.msra.mxu0 0.0
    %83 = vmatprep.subr.mxu0 0.0
    %84 = vmatpush2.msra.mxu0 0.0
    %85 = vmatprep.subr.mxu0 0.0
    %86 = vmatpush2.msra.mxu0 0.0
    %87 = vmatprep.subr.mxu0 0.0
    %88 = vmatpush2.msra.mxu0 0.0
    %89 = vmatprep.subr.mxu0 0.0
    %90 = vmatpush2.msra.mxu0 0.0
    %91 = vmatprep.subr.mxu0 0.0
    %92 = vmatpush2.msra.mxu0 0.0
    %93 = vmatprep.subr.mxu0 0.0
    %94 = vmatpush2.msra.mxu0 0.0
    %95 = vmatprep.subr.mxu0 0.0
    %96 = vmatpush2.msra.mxu0 0.0
    %97 = vmatprep.subr.mxu0 0.0
    %98 = vmatpush2.msra.mxu0 0.0
    %99 = vmatprep.subr.mxu0 0.0
    %100 = vmatpush2.msra.mxu0 0.0
    %101 = vmatprep.mubr.f32.mxu0 0.0
    %v102 = vand.u32 %v30, 4294901760
    %v103 = vsub.f32 %v30, %v102
    %v104 = vand.u32 %v103, 4294901760
    %v105 = vsub.f32 %v103, %v104
    %v106 = vand.u32 %v105, 4294901760
    %107 = vmatmul.mubr.f32.gmra.mxu0 %v106
    %v108 = vpop.f32.mrf.mxu0
    %v109 = vadd.f32 0.0, %v108
    %v110 = vpop.f32.mrf.mxu0
    %111 = vmatprep.mubr.f32.mxu0 0.0
    %v112 = vand.u32 %v33, 4294901760
    %v113 = vsub.f32 %v33, %v112
    %v114 = vand.u32 %v113, 4294901760
    %v115 = vsub.f32 %v113, %v114
    %v116 = vand.u32 %v115, 4294901760
    %117 = vmatmul.mubr.f32.gmra.mxu0 %v116
    %v118 = vpop.f32.mrf.mxu0
    %v119 = vadd.f32 0.0, %v118
    %v120 = vpop.f32.mrf.mxu0
    %121 = vdwg.mxu0
    %122 = vmatprep.subr.mxu0 0.0
    %123 = vmatpush1.msra.mxu0 0.0
    %124 = vmatprep.subr.mxu0 0.0
    %125 = vmatpush1.msra.mxu0 0.0
    %126 = vmatprep.subr.mxu0 0.0
    %127 = vmatpush1.msra.mxu0 0.0
    %128 = vmatprep.subr.mxu0 0.0
    %129 = vmatpush1.msra.mxu0 0.0
    %130 = vmatprep.subr.mxu0 0.0
    %131 = vmatpush1.msra.mxu0 0.0
    %132 = vmatprep.subr.mxu0 0.0
    %133 = vmatpush1.msra.mxu0 0.0
    %134 = vmatprep.subr.mxu0 0.0
    %135 = vmatpush1.msra.mxu0 0.0
    %136 = vmatprep.subr.mxu0 0.0
    %137 = vmatpush1.msra.mxu0 0.0
    %138 = vmatprep.subr.mxu0 0.0
    %139 = vmatpush1.msra.mxu0 0.0
    %140 = vmatprep.subr.mxu0 0.0
    %141 = vmatpush1.msra.mxu0 0.0
    %142 = vmatprep.subr.mxu0 0.0
    %143 = vmatpush1.msra.mxu0 0.0
    %144 = vmatprep.subr.mxu0 0.0
    %145 = vmatpush1.msra.mxu0 0.0
    %146 = vmatprep.subr.mxu0 0.0
    %147 = vmatpush1.msra.mxu0 0.0
    %148 = vmatprep.subr.mxu0 0.0
    %149 = vmatpush1.msra.mxu0 0.0
    %150 = vmatprep.subr.mxu0 0.0
    %v151 = vand.u32 %v27, 4294901760
    %v152 = vsub.f32 %v27, %v151
    %v153 = vand.u32 %v152, 4294901760
    %v154 = vsub.f32 %v152, %v153
    %v155 = vand.u32 %v154, 4294901760
    %156 = vmatpush1.msra.mxu0 %v155
    %157 = vmatprep.subr.mxu0 0.0
    %v158 = vand.u32 %v26, 4294901760
    %v159 = vsub.f32 %v26, %v158
    %v160 = vand.u32 %v159, 4294901760
    %v161 = vsub.f32 %v159, %v160
    %v162 = vand.u32 %v161, 4294901760
    %163 = vmatpush1.msra.mxu0 %v162
    %164 = vmatprep.subr.mxu0 0.0
    %165 = vmatpush2.msra.mxu0 0.0
    %166 = vmatprep.subr.mxu0 0.0
    %167 = vmatpush2.msra.mxu0 0.0
    %168 = vmatprep.subr.mxu0 0.0
    %169 = vmatpush2.msra.mxu0 0.0
    %170 = vmatprep.subr.mxu0 0.0
    %171 = vmatpush2.msra.mxu0 0.0
    %172 = vmatprep.subr.mxu0 0.0
    %173 = vmatpush2.msra.mxu0 0.0
    %174 = vmatprep.subr.mxu0 0.0
    %175 = vmatpush2.msra.mxu0 0.0
    %176 = vmatprep.subr.mxu0 0.0
    %177 = vmatpush2.msra.mxu0 0.0
    %178 = vmatprep.subr.mxu0 0.0
    %179 = vmatpush2.msra.mxu0 0.0
    %180 = vmatprep.subr.mxu0 0.0
    %181 = vmatpush2.msra.mxu0 0.0
    %182 = vmatprep.subr.mxu0 0.0
    %183 = vmatpush2.msra.mxu0 0.0
    %184 = vmatprep.subr.mxu0 0.0
    %185 = vmatpush2.msra.mxu0 0.0
    %186 = vmatprep.subr.mxu0 0.0
    %187 = vmatpush2.msra.mxu0 0.0
    %188 = vmatprep.subr.mxu0 0.0
    %189 = vmatpush2.msra.mxu0 0.0
    %190 = vmatprep.subr.mxu0 0.0
    %191 = vmatpush2.msra.mxu0 0.0
    %192 = vmatprep.subr.mxu0 0.0
    %193 = vmatpush2.msra.mxu0 0.0
    %194 = vmatprep.subr.mxu0 0.0
    %195 = vmatpush2.msra.mxu0 0.0
    %196 = vmatprep.mubr.f32.mxu0 0.0
    %v197 = vand.u32 %v30, 4294901760
    %198 = vmatmul.mubr.f32.gmra.mxu0 %v197
    %v199 = vpop.f32.mrf.mxu0
    %v200 = vadd.f32 %v109, %v199
    %v201 = vpop.f32.mrf.mxu0
    %202 = vmatprep.mubr.f32.mxu0 0.0
    %v203 = vand.u32 %v33, 4294901760
    %204 = vmatmul.mubr.f32.gmra.mxu0 %v203
    %v205 = vpop.f32.mrf.mxu0
    %v206 = vadd.f32 %v119, %v205
    %v207 = vpop.f32.mrf.mxu0
    %208 = vdwg.mxu0
    %209 = vmatprep.subr.mxu0 0.0
    %210 = vmatpush1.msra.mxu0 0.0
    %211 = vmatprep.subr.mxu0 0.0
    %212 = vmatpush1.msra.mxu0 0.0
    %213 = vmatprep.subr.mxu0 0.0
    %214 = vmatpush1.msra.mxu0 0.0
    %215 = vmatprep.subr.mxu0 0.0
    %216 = vmatpush1.msra.mxu0 0.0
    %217 = vmatprep.subr.mxu0 0.0
    %218 = vmatpush1.msra.mxu0 0.0
    %219 = vmatprep.subr.mxu0 0.0
    %220 = vmatpush1.msra.mxu0 0.0
    %221 = vmatprep.subr.mxu0 0.0
    %222 = vmatpush1.msra.mxu0 0.0
    %223 = vmatprep.subr.mxu0 0.0
    %224 = vmatpush1.msra.mxu0 0.0
    %225 = vmatprep.subr.mxu0 0.0
    %226 = vmatpush1.msra.mxu0 0.0
    %227 = vmatprep.subr.mxu0 0.0
    %228 = vmatpush1.msra.mxu0 0.0
    %229 = vmatprep.subr.mxu0 0.0
    %230 = vmatpush1.msra.mxu0 0.0
    %231 = vmatprep.subr.mxu0 0.0
    %232 = vmatpush1.msra.mxu0 0.0
    %233 = vmatprep.subr.mxu0 0.0
    %234 = vmatpush1.msra.mxu0 0.0
    %235 = vmatprep.subr.mxu0 0.0
    %236 = vmatpush1.msra.mxu0 0.0
    %237 = vmatprep.subr.mxu0 0.0
    %v238 = vand.u32 %v27, 4294901760
    %v239 = vsub.f32 %v27, %v238
    %240 = vmatpush1.msra.mxu0 %v239
    %241 = vmatprep.subr.mxu0 0.0
    %v242 = vand.u32 %v26, 4294901760
    %v243 = vsub.f32 %v26, %v242
    %244 = vmatpush1.msra.mxu0 %v243
    %245 = vmatprep.subr.mxu0 0.0
    %246 = vmatpush2.msra.mxu0 0.0
    %247 = vmatprep.subr.mxu0 0.0
    %248 = vmatpush2.msra.mxu0 0.0
    %249 = vmatprep.subr.mxu0 0.0
    %250 = vmatpush2.msra.mxu0 0.0
    %251 = vmatprep.subr.mxu0 0.0
    %252 = vmatpush2.msra.mxu0 0.0
    %253 = vmatprep.subr.mxu0 0.0
    %254 = vmatpush2.msra.mxu0 0.0
    %255 = vmatprep.subr.mxu0 0.0
    %256 = vmatpush2.msra.mxu0 0.0
    %257 = vmatprep.subr.mxu0 0.0
    %258 = vmatpush2.msra.mxu0 0.0
    %259 = vmatprep.subr.mxu0 0.0
    %260 = vmatpush2.msra.mxu0 0.0
    %261 = vmatprep.subr.mxu0 0.0
    %262 = vmatpush2.msra.mxu0 0.0
    %263 = vmatprep.subr.mxu0 0.0
    %264 = vmatpush2.msra.mxu0 0.0
    %265 = vmatprep.subr.mxu0 0.0
    %266 = vmatpush2.msra.mxu0 0.0
    %267 = vmatprep.subr.mxu0 0.0
    %268 = vmatpush2.msra.mxu0 0.0
    %269 = vmatprep.subr.mxu0 0.0
    %270 = vmatpush2.msra.mxu0 0.0
    %271 = vmatprep.subr.mxu0 0.0
    %272 = vmatpush2.msra.mxu0 0.0
    %273 = vmatprep.subr.mxu0 0.0
    %274 = vmatpush2.msra.mxu0 0.0
    %275 = vmatprep.subr.mxu0 0.0
    %276 = vmatpush2.msra.mxu0 0.0
    %277 = vmatprep.mubr.f32.mxu0 0.0
    %v278 = vand.u32 %v30, 4294901760
    %v279 = vsub.f32 %v30, %v278
    %280 = vmatmul.mubr.f32.gmra.mxu0 %v279
    %v281 = vpop.f32.mrf.mxu0
    %v282 = vadd.f32 %v200, %v281
    %v283 = vpop.f32.mrf.mxu0
    %284 = vmatprep.mubr.f32.mxu0 0.0
    %v285 = vand.u32 %v33, 4294901760
    %v286 = vsub.f32 %v33, %v285
    %287 = vmatmul.mubr.f32.gmra.mxu0 %v286
    %v288 = vpop.f32.mrf.mxu0
    %v289 = vadd.f32 %v206, %v288
    %v290 = vpop.f32.mrf.mxu0
    %291 = vdwg.mxu0
    %292 = vmatprep.subr.mxu0 0.0
    %293 = vmatpush1.msra.mxu0 0.0
    %294 = vmatprep.subr.mxu0 0.0
    %295 = vmatpush1.msra.mxu0 0.0
    %296 = vmatprep.subr.mxu0 0.0
    %297 = vmatpush1.msra.mxu0 0.0
    %298 = vmatprep.subr.mxu0 0.0
    %299 = vmatpush1.msra.mxu0 0.0
    %300 = vmatprep.subr.mxu0 0.0
    %301 = vmatpush1.msra.mxu0 0.0
    %302 = vmatprep.subr.mxu0 0.0
    %303 = vmatpush1.msra.mxu0 0.0
    %304 = vmatprep.subr.mxu0 0.0
    %305 = vmatpush1.msra.mxu0 0.0
    %306 = vmatprep.subr.mxu0 0.0
    %307 = vmatpush1.msra.mxu0 0.0
    %308 = vmatprep.subr.mxu0 0.0
    %309 = vmatpush1.msra.mxu0 0.0
    %310 = vmatprep.subr.mxu0 0.0
    %311 = vmatpush1.msra.mxu0 0.0
    %312 = vmatprep.subr.mxu0 0.0
    %313 = vmatpush1.msra.mxu0 0.0
    %314 = vmatprep.subr.mxu0 0.0
    %315 = vmatpush1.msra.mxu0 0.0
    %316 = vmatprep.subr.mxu0 0.0
    %317 = vmatpush1.msra.mxu0 0.0
    %318 = vmatprep.subr.mxu0 0.0
    %319 = vmatpush1.msra.mxu0 0.0
    %320 = vmatprep.subr.mxu0 0.0
    %v321 = vand.u32 %v27, 4294901760
    %322 = vmatpush1.msra.mxu0 %v321
    %323 = vmatprep.subr.mxu0 0.0
    %v324 = vand.u32 %v26, 4294901760
    %325 = vmatpush1.msra.mxu0 %v324
    %326 = vmatprep.subr.mxu0 0.0
    %327 = vmatpush2.msra.mxu0 0.0
    %328 = vmatprep.subr.mxu0 0.0
    %329 = vmatpush2.msra.mxu0 0.0
    %330 = vmatprep.subr.mxu0 0.0
    %331 = vmatpush2.msra.mxu0 0.0
    %332 = vmatprep.subr.mxu0 0.0
    %333 = vmatpush2.msra.mxu0 0.0
    %334 = vmatprep.subr.mxu0 0.0
    %335 = vmatpush2.msra.mxu0 0.0
    %336 = vmatprep.subr.mxu0 0.0
    %337 = vmatpush2.msra.mxu0 0.0
    %338 = vmatprep.subr.mxu0 0.0
    %339 = vmatpush2.msra.mxu0 0.0
    %340 = vmatprep.subr.mxu0 0.0
    %341 = vmatpush2.msra.mxu0 0.0
    %342 = vmatprep.subr.mxu0 0.0
    %343 = vmatpush2.msra.mxu0 0.0
    %344 = vmatprep.subr.mxu0 0.0
    %345 = vmatpush2.msra.mxu0 0.0
    %346 = vmatprep.subr.mxu0 0.0
    %347 = vmatpush2.msra.mxu0 0.0
    %348 = vmatprep.subr.mxu0 0.0
    %349 = vmatpush2.msra.mxu0 0.0
    %350 = vmatprep.subr.mxu0 0.0
    %351 = vmatpush2.msra.mxu0 0.0
    %352 = vmatprep.subr.mxu0 0.0
    %353 = vmatpush2.msra.mxu0 0.0
    %354 = vmatprep.subr.mxu0 0.0
    %355 = vmatpush2.msra.mxu0 0.0
    %356 = vmatprep.subr.mxu0 0.0
    %357 = vmatpush2.msra.mxu0 0.0
    %358 = vmatprep.mubr.f32.mxu0 0.0
    %v359 = vand.u32 %v30, 4294901760
    %v360 = vsub.f32 %v30, %v359
    %v361 = vand.u32 %v360, 4294901760
    %362 = vmatmul.mubr.f32.gmra.mxu0 %v361
    %v363 = vpop.f32.mrf.mxu0
    %v364 = vadd.f32 %v282, %v363
    %v365 = vpop.f32.mrf.mxu0
    %366 = vmatprep.mubr.f32.mxu0 0.0
    %v367 = vand.u32 %v33, 4294901760
    %v368 = vsub.f32 %v33, %v367
    %v369 = vand.u32 %v368, 4294901760
    %370 = vmatmul.mubr.f32.gmra.mxu0 %v369
    %v371 = vpop.f32.mrf.mxu0
    %v372 = vadd.f32 %v289, %v371
    %v373 = vpop.f32.mrf.mxu0
    %374 = vdwg.mxu0
    %375 = vmatprep.subr.mxu0 0.0
    %376 = vmatpush1.msra.mxu0 0.0
    %377 = vmatprep.subr.mxu0 0.0
    %378 = vmatpush1.msra.mxu0 0.0
    %379 = vmatprep.subr.mxu0 0.0
    %380 = vmatpush1.msra.mxu0 0.0
    %381 = vmatprep.subr.mxu0 0.0
    %382 = vmatpush1.msra.mxu0 0.0
    %383 = vmatprep.subr.mxu0 0.0
    %384 = vmatpush1.msra.mxu0 0.0
    %385 = vmatprep.subr.mxu0 0.0
    %386 = vmatpush1.msra.mxu0 0.0
    %387 = vmatprep.subr.mxu0 0.0
    %388 = vmatpush1.msra.mxu0 0.0
    %389 = vmatprep.subr.mxu0 0.0
    %390 = vmatpush1.msra.mxu0 0.0
    %391 = vmatprep.subr.mxu0 0.0
    %392 = vmatpush1.msra.mxu0 0.0
    %393 = vmatprep.subr.mxu0 0.0
    %394 = vmatpush1.msra.mxu0 0.0
    %395 = vmatprep.subr.mxu0 0.0
    %396 = vmatpush1.msra.mxu0 0.0
    %397 = vmatprep.subr.mxu0 0.0
    %398 = vmatpush1.msra.mxu0 0.0
    %399 = vmatprep.subr.mxu0 0.0
    %400 = vmatpush1.msra.mxu0 0.0
    %401 = vmatprep.subr.mxu0 0.0
    %402 = vmatpush1.msra.mxu0 0.0
    %403 = vmatprep.subr.mxu0 0.0
    %v404 = vand.u32 %v27, 4294901760
    %v405 = vsub.f32 %v27, %v404
    %v406 = vand.u32 %v405, 4294901760
    %407 = vmatpush1.msra.mxu0 %v406
    %408 = vmatprep.subr.mxu0 0.0
    %v409 = vand.u32 %v26, 4294901760
    %v410 = vsub.f32 %v26, %v409
    %v411 = vand.u32 %v410, 4294901760
    %412 = vmatpush1.msra.mxu0 %v411
    %413 = vmatprep.subr.mxu0 0.0
    %414 = vmatpush2.msra.mxu0 0.0
    %415 = vmatprep.subr.mxu0 0.0
    %416 = vmatpush2.msra.mxu0 0.0
    %417 = vmatprep.subr.mxu0 0.0
    %418 = vmatpush2.msra.mxu0 0.0
    %419 = vmatprep.subr.mxu0 0.0
    %420 = vmatpush2.msra.mxu0 0.0
    %421 = vmatprep.subr.mxu0 0.0
    %422 = vmatpush2.msra.mxu0 0.0
    %423 = vmatprep.subr.mxu0 0.0
    %424 = vmatpush2.msra.mxu0 0.0
    %425 = vmatprep.subr.mxu0 0.0
    %426 = vmatpush2.msra.mxu0 0.0
    %427 = vmatprep.subr.mxu0 0.0
    %428 = vmatpush2.msra.mxu0 0.0
    %429 = vmatprep.subr.mxu0 0.0
    %430 = vmatpush2.msra.mxu0 0.0
    %431 = vmatprep.subr.mxu0 0.0
    %432 = vmatpush2.msra.mxu0 0.0
    %433 = vmatprep.subr.mxu0 0.0
    %434 = vmatpush2.msra.mxu0 0.0
    %435 = vmatprep.subr.mxu0 0.0
    %436 = vmatpush2.msra.mxu0 0.0
    %437 = vmatprep.subr.mxu0 0.0
    %438 = vmatpush2.msra.mxu0 0.0
    %439 = vmatprep.subr.mxu0 0.0
    %440 = vmatpush2.msra.mxu0 0.0
    %441 = vmatprep.subr.mxu0 0.0
    %442 = vmatpush2.msra.mxu0 0.0
    %443 = vmatprep.subr.mxu0 0.0
    %444 = vmatpush2.msra.mxu0 0.0
    %445 = vmatprep.mubr.f32.mxu0 0.0
    %v446 = vand.u32 %v30, 4294901760
    %447 = vmatmul.mubr.f32.gmra.mxu0 %v446
    %v448 = vpop.f32.mrf.mxu0
    %v449 = vadd.f32 %v364, %v448
    %v450 = vpop.f32.mrf.mxu0
    %451 = vmatprep.mubr.f32.mxu0 0.0
    %v452 = vand.u32 %v33, 4294901760
    %453 = vmatmul.mubr.f32.gmra.mxu0 %v452
    %v454 = vpop.f32.mrf.mxu0
    %v455 = vadd.f32 %v372, %v454
    %v456 = vpop.f32.mrf.mxu0
    %457 = vdwg.mxu0
    %458 = vmatprep.subr.mxu0 0.0
    %459 = vmatpush1.msra.mxu0 0.0
    %460 = vmatprep.subr.mxu0 0.0
    %461 = vmatpush1.msra.mxu0 0.0
    %462 = vmatprep.subr.mxu0 0.0
    %463 = vmatpush1.msra.mxu0 0.0
    %464 = vmatprep.subr.mxu0 0.0
    %465 = vmatpush1.msra.mxu0 0.0
    %466 = vmatprep.subr.mxu0 0.0
    %467 = vmatpush1.msra.mxu0 0.0
    %468 = vmatprep.subr.mxu0 0.0
    %469 = vmatpush1.msra.mxu0 0.0
    %470 = vmatprep.subr.mxu0 0.0
    %471 = vmatpush1.msra.mxu0 0.0
    %472 = vmatprep.subr.mxu0 0.0
    %473 = vmatpush1.msra.mxu0 0.0
    %474 = vmatprep.subr.mxu0 0.0
    %475 = vmatpush1.msra.mxu0 0.0
    %476 = vmatprep.subr.mxu0 0.0
    %477 = vmatpush1.msra.mxu0 0.0
    %478 = vmatprep.subr.mxu0 0.0
    %479 = vmatpush1.msra.mxu0 0.0
    %480 = vmatprep.subr.mxu0 0.0
    %481 = vmatpush1.msra.mxu0 0.0
    %482 = vmatprep.subr.mxu0 0.0
    %483 = vmatpush1.msra.mxu0 0.0
    %484 = vmatprep.subr.mxu0 0.0
    %485 = vmatpush1.msra.mxu0 0.0
    %486 = vmatprep.subr.mxu0 0.0
    %v487 = vand.u32 %v27, 4294901760
    %488 = vmatpush1.msra.mxu0 %v487
    %489 = vmatprep.subr.mxu0 0.0
    %v490 = vand.u32 %v26, 4294901760
    %491 = vmatpush1.msra.mxu0 %v490
    %492 = vmatprep.subr.mxu0 0.0
    %493 = vmatpush2.msra.mxu0 0.0
    %494 = vmatprep.subr.mxu0 0.0
    %495 = vmatpush2.msra.mxu0 0.0
    %496 = vmatprep.subr.mxu0 0.0
    %497 = vmatpush2.msra.mxu0 0.0
    %498 = vmatprep.subr.mxu0 0.0
    %499 = vmatpush2.msra.mxu0 0.0
    %500 = vmatprep.subr.mxu0 0.0
    %501 = vmatpush2.msra.mxu0 0.0
    %502 = vmatprep.subr.mxu0 0.0
    %503 = vmatpush2.msra.mxu0 0.0
    %504 = vmatprep.subr.mxu0 0.0
    %505 = vmatpush2.msra.mxu0 0.0
    %506 = vmatprep.subr.mxu0 0.0
    %507 = vmatpush2.msra.mxu0 0.0
    %508 = vmatprep.subr.mxu0 0.0
    %509 = vmatpush2.msra.mxu0 0.0
    %510 = vmatprep.subr.mxu0 0.0
    %511 = vmatpush2.msra.mxu0 0.0
    %512 = vmatprep.subr.mxu0 0.0
    %513 = vmatpush2.msra.mxu0 0.0
    %514 = vmatprep.subr.mxu0 0.0
    %515 = vmatpush2.msra.mxu0 0.0
    %516 = vmatprep.subr.mxu0 0.0
    %517 = vmatpush2.msra.mxu0 0.0
    %518 = vmatprep.subr.mxu0 0.0
    %519 = vmatpush2.msra.mxu0 0.0
    %520 = vmatprep.subr.mxu0 0.0
    %521 = vmatpush2.msra.mxu0 0.0
    %522 = vmatprep.subr.mxu0 0.0
    %523 = vmatpush2.msra.mxu0 0.0
    %524 = vmatprep.mubr.f32.mxu0 0.0
    %v525 = vand.u32 %v30, 4294901760
    %526 = vmatmul.mubr.f32.gmra.mxu0 %v525
    %v527 = vpop.f32.mrf.mxu0
    %v528 = vadd.f32 %v449, %v527
    %v529 = vpop.f32.mrf.mxu0
    %530 = vmatprep.mubr.f32.mxu0 0.0
    %v531 = vand.u32 %v33, 4294901760
    %532 = vmatmul.mubr.f32.gmra.mxu0 %v531
    %v533 = vpop.f32.mrf.mxu0
    %v534 = vadd.f32 %v455, %v533
    %v535 = vpop.f32.mrf.mxu0
    %536 = vdwg.mxu0
    %537 = vst [vmem:[#allocation2] sm:$0xff] %v528
    %538 = vst [vmem:[#allocation2 + $0x8] sm:$0xff] %v534
    // Predicated region
    $region10: #{tpu_custom_call.1} parent=1 // pred_check
      _
    $region11: #{tpu_custom_call.1} parent=1 // pred_check_branch
      %540 = sbr.rel (0) target = $region13
    $region12: #{tpu_custom_call.1} parent=1 // pred_region
      %s542 = ssub.s32 256, 256
      %543 = vsyncadd [#allocation3], %s542
      %s544 = sshll.u32 [#allocation2], 4
      %s545 = int_to_ptr.vmem [resolvable:$true] %s544
      %550 = dma.vmem_to_hbm [thread:$0]  %s545, 256, %s2, [#allocation3], 128, 128, 8
    $region13: #{tpu_custom_call.1} parent=1 // pred_fallthru
      _
    // Predicated region
    $region14: #{tpu_custom_call.1} parent=1 // pred_check
      _
    $region15: #{tpu_custom_call.1} parent=1 // pred_check_branch
      %552 = sbr.rel (0) target = $region17
    $region16: #{tpu_custom_call.1} parent=1 // pred_region
      %553 = dma.done [#allocation3], 256
    $region17: #{tpu_custom_call.1} parent=1 // pred_fallthru
      _
    %554 = vsyncpa [#allocation3], 1

</llo_original>
